<compile_context>
chip_gen: v5e
topology: v5e:2x2
jax: 0.10.0
libtpu: 0.0.40
codegen_flags: <defaults>
</compile_context>

<pallas_src>
import jax
import jax.numpy as jnp
from jax import lax
from jax.experimental import pallas as pl
from jax.experimental.pallas import tpu as pltpu

BN_EPS = 1e-5


def _linear_bn_relu_kernel(x_ref, w_ref, gb_ref, o_ref, acc_ref):
    # x:   (B, tk)        activation slice along K
    # w:   (tk, tn)       weight slice, already (K, N) layout -> plain MXU feed
    # gb:  (2, tn)        row 0 = gamma, row 1 = beta
    # o:   (B, tn)        output tile (written only on the last K step)
    # acc: (B, tn) f32    VMEM accumulator, persists across the K axis
    k = pl.program_id(1)

    @pl.when(k == 0)
    def _():
        acc_ref[...] = jnp.zeros_like(acc_ref)

    acc_ref[...] += jnp.dot(x_ref[...], w_ref[...],
                            preferred_element_type=jnp.float32)

    @pl.when(k == pl.num_programs(1) - 1)
    def _():
        y = acc_ref[...]                                      # (B, tn) f32
        inv_b = 1.0 / y.shape[0]
        # Training-mode BatchNorm1d statistics: batch mean, *biased* variance.
        mean = jnp.sum(y, axis=0, keepdims=True) * inv_b      # (1, tn)
        centered = y - mean                                   # y dead after this
        var = jnp.sum(centered * centered, axis=0, keepdims=True) * inv_b
        gb = gb_ref[...].astype(jnp.float32)
        scale = gb[0:1, :] * lax.rsqrt(var + BN_EPS)          # gamma/sqrt(var+eps)
        # gamma*(y-mean)/sqrt(var+eps) + beta, then ReLU, as one FMA + max.
        o_ref[...] = jnp.maximum(centered * scale + gb[1:2, :], 0.0
                                 ).astype(o_ref.dtype)


def _largest_dividing_tile(total, max_tile, granule=128):
    """Largest multiple of `granule` that divides `total` and is <= max_tile.

    `total` must itself be a multiple of `granule` (so `granule` always works).
    """
    t = max(granule, min(max_tile, total))
    t -= t % granule
    while t > granule and total % t:
        t -= granule
    return t


def linear_bn_relu(x, weight, gamma, beta, bias=None, *,
                   tn_max=512, tk_max=2048, mxu_dtype=None):
    """Fused Linear -> BatchNorm1d(training mode) -> ReLU.

    x:      (B, in_planes)
    weight: (out_planes, in_planes)   -- PyTorch nn.Linear layout
    gamma/beta: (out_planes,)         -- BatchNorm1d affine
    bias:   accepted for API parity but never loaded (exactly cancelled by the
            BN mean subtraction).
    tn_max: max feature tile (multiple of 128). 512 fills the 256-wide MXU on
            v6e/v7x; 256 is already enough on v5e (4x128 MXU).
    tk_max: max contraction tile (multiple of 128). Lower tn_max/tk_max on v7x
            (64 MiB VMEM per TC) for very large B; raise on v6e (128 MiB).
    mxu_dtype: optionally cast x/weight (e.g. jnp.bfloat16) before the matmul to
            hit the native bf16 MXU path on v6e/v7x and halve DMA bytes; the BN
            epilogue and accumulation stay f32.  None = keep input dtype.
    """
    del bias  # exactly cancelled by the BN mean subtraction
    out_dtype = x.dtype
    B, in_planes = x.shape
    out_planes, _ = weight.shape

    if mxu_dtype is not None and x.dtype != jnp.dtype(mxu_dtype):
        x = x.astype(mxu_dtype)
        weight = weight.astype(mxu_dtype)

    # Feature axis: pad to a lane-dense multiple of 128, pick the widest tile
    # (<= tn_max) that divides it so stores stay unmasked full-lane vst.
    n_padded = out_planes + (-out_planes) % 128
    n_pad = n_padded - out_planes
    tn = _largest_dividing_tile(n_padded, tn_max)

    # Contraction axis: single shot if it fits, else tk_max-wide tiles.
    if in_planes <= tk_max:
        tk, k_pad = in_planes, 0
    else:
        tk = tk_max
        k_pad = (-in_planes) % tk
    k_padded = in_planes + k_pad
    n_tiles, k_tiles = n_padded // tn, k_padded // tk

    # One-time parameter massaging (hoist to init time in a real model):
    #   * weight -> (K, N) layout so the kernel's dot needs no per-tile transpose.
    #   * gamma/beta stacked -> one small (2, N) operand -> one DMA per step.
    #   * zero padding: padded features give y=0, var=0, gamma=0 -> output 0
    #     (no NaN; do NOT pad gamma with 1).  Padded K rows/cols contribute 0.
    if n_pad:
        weight = jnp.pad(weight, ((0, n_pad), (0, 0)))
        gamma = jnp.pad(gamma, (0, n_pad))
        beta = jnp.pad(beta, (0, n_pad))
    w_t = weight.T                                   # (in_planes, n_padded)
    if k_pad:
        x = jnp.pad(x, ((0, 0), (0, k_pad)))
        w_t = jnp.pad(w_t, ((0, k_pad), (0, 0)))
    gb = jnp.stack([gamma, beta], axis=0)            # (2, n_padded)

    # Scoped-VMEM budget from the actual per-step footprint:
    #   double-buffered x / w / gb / out tiles + accumulator + epilogue temps.
    sz_x = x.dtype.itemsize
    sz_w = w_t.dtype.itemsize
    sz_o = jnp.dtype(out_dtype).itemsize
    need = (2 * B * tk * sz_x            # x block x2
            + 2 * tk * tn * sz_w         # weight block x2
            + 2 * 8 * tn * 4             # gb block x2 (sublane-padded)
            + 2 * B * tn * sz_o          # out block x2
            + 3 * B * tn * 4)            # acc + epilogue f32 temps
    vmem_limit = int(min(max(2 * need, 32 << 20), 100 << 20))

    out = pl.pallas_call(
        _linear_bn_relu_kernel,
        out_shape=jax.ShapeDtypeStruct((B, n_padded), out_dtype),
        grid=(n_tiles, k_tiles),
        in_specs=[
            # Activations: one K slice per inner step.  (When k_tiles == 1 the
            # index is constant so the DMA is issued once and the block stays
            # resident across feature tiles.)
            pl.BlockSpec((B, tk), lambda j, k: (0, k)),
            # Weight tile already in (K, N) layout -> straight MXU feed.
            pl.BlockSpec((tk, tn), lambda j, k: (k, j)),
            # gamma/beta stacked.
            pl.BlockSpec((2, tn), lambda j, k: (0, j)),
        ],
        out_specs=pl.BlockSpec((B, tn), lambda j, k: (0, j)),
        scratch_shapes=[pltpu.VMEM((B, tn), jnp.float32)],
        compiler_params=pltpu.CompilerParams(
            # Feature tiles independent -> megacore-shard on v7x; the K
            # reduction axis is innermost and 'arbitrary'.
            dimension_semantics=("parallel", "arbitrary"),
            vmem_limit_bytes=vmem_limit,
        ),
    )(x, w_t, gb)

    return out[:, :out_planes] if n_pad else out


def reference(x, weight, bias, gamma, beta):
    y = x @ weight.T + bias
    mean = jnp.mean(y, axis=0, keepdims=True)
    var = jnp.mean((y - mean) ** 2, axis=0, keepdims=True)
    y_hat = (y - mean) / jnp.sqrt(var + BN_EPS)
    return jnp.maximum(y_hat * gamma + beta, 0.0)


if __name__ == "__main__":
    B, in_planes, out_planes = 8, 32, 64

    key = jax.random.PRNGKey(0)
    kx, kw, kb = jax.random.split(key, 3)

    x = jax.random.normal(kx, (B, in_planes), dtype=jnp.float32)

    # nn.Linear-style uniform fan-in init (deterministic).
    bound = 1.0 / (in_planes ** 0.5)
    weight = jax.random.uniform(
        kw, (out_planes, in_planes), minval=-bound, maxval=bound,
        dtype=jnp.float32)
    bias = jax.random.uniform(
        kb, (out_planes,), minval=-bound, maxval=bound, dtype=jnp.float32)
    # BatchNorm1d default affine init.
    gamma = jnp.ones((out_planes,), jnp.float32)
    beta = jnp.zeros((out_planes,), jnp.float32)

    out = linear_bn_relu(x, weight, gamma, beta, bias)
    out = jax.block_until_ready(out)

    ref = reference(x, weight, bias, gamma, beta)
    assert out.shape == (B, out_planes)
    assert jnp.allclose(out, ref, atol=1e-4, rtol=1e-4), (
        float(jnp.max(jnp.abs(out - ref))))

    print("KERNEL_OK")
</pallas_src>

<mosaic_0001>
module attributes {stable_mosaic.version = 11 : i64} {
  func.func @_linear_bn_relu_kernel(%arg0: i32, %arg1: i32, %arg2: memref<8x32xf32, #tpu.memory_space<vmem>>, %arg3: memref<32x128xf32, #tpu.memory_space<vmem>>, %arg4: memref<2x128xf32, #tpu.memory_space<vmem>>, %arg5: memref<8x128xf32, #tpu.memory_space<vmem>>, %arg6: memref<8x128xf32, #tpu.memory_space<vmem>>) attributes {dimension_semantics = [#tpu.dimension_semantics<parallel>, #tpu.dimension_semantics<arbitrary>], iteration_bounds = array<i64: 1, 1>, scalar_prefetch = 0 : i64, scratch_operands = 1 : i64, tpu.core_type = #tpu.core_type<tc>, window_params = [{transform_indices = @transform_0, window_bounds = array<i64: 8, 32>}, {transform_indices = @transform_1, window_bounds = array<i64: 32, 128>}, {transform_indices = @transform_2, window_bounds = array<i64: 2, 128>}, {transform_indices = @transform_3, window_bounds = array<i64: 8, 128>}]} {
    %c0_i32 = arith.constant 0 : i32
    %0 = arith.cmpi eq, %arg1, %c0_i32 : i32
    %1 = arith.extui %0 : i1 to i32
    %c0_i32_0 = arith.constant 0 : i32
    %2 = arith.cmpi ne, %1, %c0_i32_0 : i32
    scf.if %2 {
      %cst_10 = arith.constant 0.000000e+00 : f32
      %12 = vector.broadcast %cst_10 : f32 to vector<8x128xf32>
      %c0_11 = arith.constant 0 : index
      %c0_12 = arith.constant 0 : index
      %13 = vector.load %arg6[%c0_11, %c0_12] : memref<8x128xf32, #tpu.memory_space<vmem>>, vector<8x128xf32>
      tpu.vector_store %arg6[%c0_11, %c0_12], %12 {strides = array<i32>} : memref<8x128xf32, #tpu.memory_space<vmem>>, vector<8x128xf32>,
    } else {
    }
    %c0 = arith.constant 0 : index
    %c0_1 = arith.constant 0 : index
    %3 = vector.load %arg6[%c0, %c0_1] : memref<8x128xf32, #tpu.memory_space<vmem>>, vector<8x128xf32>
    %c0_2 = arith.constant 0 : index
    %c0_3 = arith.constant 0 : index
    %4 = vector.load %arg2[%c0_2, %c0_3] : memref<8x32xf32, #tpu.memory_space<vmem>>, vector<8x32xf32>
    %c0_4 = arith.constant 0 : index
    %c0_5 = arith.constant 0 : index
    %5 = vector.load %arg3[%c0_4, %c0_5] : memref<32x128xf32, #tpu.memory_space<vmem>>, vector<32x128xf32>
    %cst = arith.constant dense<0.000000e+00> : vector<8x128xf32>
    %6 = tpu.matmul %4, %5, %cst {dimension_numbers = #tpu.dot_dimension_numbers<[1], [0], [0], [1], [0, 0, 1, 1], [], []>} : vector<8x32xf32>, vector<32x128xf32>, vector<8x128xf32> -> vector<8x128xf32>
    %7 = arith.addf %3, %6 : vector<8x128xf32>
    %c0_6 = arith.constant 0 : index
    %c0_7 = arith.constant 0 : index
    %8 = vector.load %arg6[%c0_6, %c0_7] : memref<8x128xf32, #tpu.memory_space<vmem>>, vector<8x128xf32>
    tpu.vector_store %arg6[%c0_6, %c0_7], %7 {strides = array<i32>} : memref<8x128xf32, #tpu.memory_space<vmem>>, vector<8x128xf32>,
    %c0_i32_8 = arith.constant 0 : i32
    %9 = arith.cmpi eq, %arg1, %c0_i32_8 : i32
    %10 = arith.extui %9 : i1 to i32
    %c0_i32_9 = arith.constant 0 : i32
    %11 = arith.cmpi ne, %10, %c0_i32_9 : i32
    scf.if %11 {
      %c0_10 = arith.constant 0 : index
      %c0_11 = arith.constant 0 : index
      %12 = vector.load %arg6[%c0_10, %c0_11] : memref<8x128xf32, #tpu.memory_space<vmem>>, vector<8x128xf32>
      %cst_12 = arith.constant dense<0.000000e+00> : vector<128xf32>
      %13 = vector.multi_reduction <add>, %12, %cst_12 [0] : vector<8x128xf32> to vector<128xf32>
      %14 = vector.shape_cast %13 : vector<128xf32> to vector<1x128xf32>
      %cst_13 = arith.constant 1.250000e-01 : f32
      %15 = vector.broadcast %cst_13 : f32 to vector<1x128xf32>
      %16 = arith.mulf %14, %15 : vector<1x128xf32>
      %17 = vector.broadcast %16 : vector<1x128xf32> to vector<8x128xf32>
      %18 = arith.subf %12, %17 : vector<8x128xf32>
      %19 = arith.mulf %18, %18 : vector<8x128xf32>
      %cst_14 = arith.constant dense<0.000000e+00> : vector<128xf32>
      %20 = vector.multi_reduction <add>, %19, %cst_14 [0] : vector<8x128xf32> to vector<128xf32>
      %21 = vector.shape_cast %20 : vector<128xf32> to vector<1x128xf32>
      %cst_15 = arith.constant 1.250000e-01 : f32
      %22 = vector.broadcast %cst_15 : f32 to vector<1x128xf32>
      %23 = arith.mulf %21, %22 : vector<1x128xf32>
      %c0_16 = arith.constant 0 : index
      %c0_17 = arith.constant 0 : index
      %24 = vector.load %arg4[%c0_16, %c0_17] : memref<2x128xf32, #tpu.memory_space<vmem>>, vector<2x128xf32>
      %25 = vector.extract_strided_slice %24 {offsets = [0, 0], sizes = [1, 128], strides = [1, 1]} : vector<2x128xf32> to vector<1x128xf32>
      %cst_18 = arith.constant 9.99999974E-6 : f32
      %26 = vector.broadcast %cst_18 : f32 to vector<1x128xf32>
      %27 = arith.addf %23, %26 : vector<1x128xf32>
      %28 = math.rsqrt %27 : vector<1x128xf32>
      %29 = arith.mulf %25, %28 : vector<1x128xf32>
      %30 = vector.broadcast %29 : vector<1x128xf32> to vector<8x128xf32>
      %31 = arith.mulf %18, %30 : vector<8x128xf32>
      %32 = vector.extract_strided_slice %24 {offsets = [1, 0], sizes = [1, 128], strides = [1, 1]} : vector<2x128xf32> to vector<1x128xf32>
      %33 = vector.broadcast %32 : vector<1x128xf32> to vector<8x128xf32>
      %34 = arith.addf %31, %33 : vector<8x128xf32>
      %cst_19 = arith.constant 0.000000e+00 : f32
      %35 = vector.broadcast %cst_19 : f32 to vector<8x128xf32>
      %36 = arith.maximumf %34, %35 : vector<8x128xf32>
      %c0_20 = arith.constant 0 : index
      %c0_21 = arith.constant 0 : index
      %37 = vector.load %arg5[%c0_20, %c0_21] : memref<8x128xf32, #tpu.memory_space<vmem>>, vector<8x128xf32>
      tpu.vector_store %arg5[%c0_20, %c0_21], %36 {strides = array<i32>} : memref<8x128xf32, #tpu.memory_space<vmem>>, vector<8x128xf32>,
    } else {
    }
    return
  }
  func.func @transform_0(%arg0: i32, %arg1: i32) -> (i32, i32) {
    %c0_i32 = arith.constant 0 : i32
    %c0_i32_0 = arith.constant 0 : i32
    return %c0_i32, %arg1 : i32, i32
  }
  func.func @transform_1(%arg0: i32, %arg1: i32) -> (i32, i32) {
    %c0_i32 = arith.constant 0 : i32
    return %arg1, %arg0 : i32, i32
  }
  func.func @transform_2(%arg0: i32, %arg1: i32) -> (i32, i32) {
    %c0_i32 = arith.constant 0 : i32
    %c0_i32_0 = arith.constant 0 : i32
    return %c0_i32, %arg0 : i32, i32
  }
  func.func @transform_3(%arg0: i32, %arg1: i32) -> (i32, i32) {
    %c0_i32 = arith.constant 0 : i32
    %c0_i32_0 = arith.constant 0 : i32
    return %c0_i32, %arg0 : i32, i32
  }
}

</mosaic_0001>

<llo_original>
// kernel: tpu_custom_call.1
$region0: #{tpu_custom_call.1}
  #allocation0 [shape = 'u32[]', space=smem, size = 0x4, offset = 0x4, fixed_abs, tag = 'smem constant byte address 0x4 - core index']
  #allocation1 [shape = 'u32[72,128]{1,0:T(1,128)}', space=vmem, size = 0x9000, scoped, tag = 'internal scratch']
  #allocation2 [shape = 'f32[8,128]{1,0:T(8,128)}', space=vmem, size = 0x1000, scoped, tag = 'scratch operand']
  %s0 = inlined_call_operand.hbm [shape: f32[8,32], index: 0, kind: input, shape index: {}]
  %s1 = inlined_call_operand.hbm [shape: f32[32,128], index: 1, kind: input, shape index: {}]
  %s2 = inlined_call_operand.hbm [shape: f32[2,128], index: 2, kind: input, shape index: {}]
  %s3 = inlined_call_operand.hbm [shape: f32[8,128], index: 3, kind: output, shape index: {}]
  %s4 = sld [smem:[#allocation0]]
  $region42: #{tpu_custom_call.1} parent=0
    _
  %s6 = ssub.s32 1, %s4
  %s7 = scalar_select 0, %s6, %s4
  $region1: #{tpu_custom_call.1} parent=0
    #allocation3 [shape = 'u8[4096]{0}', space=vmem, size = 0x1000, scoped, tag = 'input window, operand 0, single buffered']
    #allocation4 [shape = 's32[1]{0}', space=sflag, size = 0x4, scoped, tag = 'scoped memory for tpu_custom_call.1']
    #allocation5 [shape = 's32[1]{0}', space=sflag, size = 0x4, scoped, tag = 'scoped memory for tpu_custom_call.1']
    #allocation6 [shape = 'u8[16384]{0}', space=vmem, size = 0x4000, scoped, tag = 'input window, operand 1, single buffered']
    #allocation7 [shape = 's32[1]{0}', space=sflag, size = 0x4, scoped, tag = 'scoped memory for tpu_custom_call.1']
    #allocation8 [shape = 'u8[1024]{0}', space=vmem, size = 0x400, scoped, tag = 'input window, operand 2, single buffered']
    #allocation9 [shape = 'u8[4096]{0}', space=vmem, size = 0x1000, scoped, tag = 'output window, operand 0, single buffered']
    %8 = vsyncpa [#allocation4], 0
    %9 = vsyncpa [#allocation7], 0
    %10 = vsyncpa [#allocation5], 0
    // Predicated region
    $region2: #{tpu_custom_call.1} parent=1 // pred_check
      _
    $region3: #{tpu_custom_call.1} parent=1 // pred_check_branch
      %12 = sbr.rel (0) target = $region5
    $region4: #{tpu_custom_call.1} parent=1 // pred_region
      %14 = vsyncadd [#allocation4], 0
      %s16 = sshll.u32 %s0, 4
      %s17 = int_to_ptr.hbm [resolvable:$true] %s16
      %s18 = sshll.u32 [#allocation3], 4
      %s19 = int_to_ptr.vmem [resolvable:$true] %s18
      %21 = dma.hbm_to_vmem [thread:$0]  %s17, 128, %s19, [#allocation4]
    $region5: #{tpu_custom_call.1} parent=1 // pred_fallthru
      _
    // Predicated region
    $region6: #{tpu_custom_call.1} parent=1 // pred_check
      _
    $region7: #{tpu_custom_call.1} parent=1 // pred_check_branch
      %23 = sbr.rel (0) target = $region9
    $region8: #{tpu_custom_call.1} parent=1 // pred_region
      %25 = vsyncadd [#allocation7], 0
      %s26 = sshll.u32 %s1, 4
      %s27 = int_to_ptr.hbm [resolvable:$true] %s26
      %s28 = sshll.u32 [#allocation6], 4
      %s29 = int_to_ptr.vmem [resolvable:$true] %s28
      %34 = dma.hbm_to_vmem [thread:$0]  %s27, 512, %s29, [#allocation7], 128, 128, 8
    $region9: #{tpu_custom_call.1} parent=1 // pred_fallthru
      _
    // Predicated region
    $region10: #{tpu_custom_call.1} parent=1 // pred_check
      _
    $region11: #{tpu_custom_call.1} parent=1 // pred_check_branch
      %36 = sbr.rel (0) target = $region13
    $region12: #{tpu_custom_call.1} parent=1 // pred_region
      %38 = vsyncadd [#allocation7], 0
      %s40 = sshll.u32 %s2, 4
      %s41 = int_to_ptr.hbm [resolvable:$true] %s40
      %s42 = sshll.u32 [#allocation8], 4
      %s43 = int_to_ptr.vmem [resolvable:$true] %s42
      %45 = dma.hbm_to_vmem [thread:$0]  %s41, 32, %s43, [#allocation7]
    $region13: #{tpu_custom_call.1} parent=1 // pred_fallthru
      _
    // Predicated region
    $region14: #{tpu_custom_call.1} parent=1 // pred_check
      _
    $region15: #{tpu_custom_call.1} parent=1 // pred_check_branch
      %47 = sbr.rel (0) target = $region17
    $region16: #{tpu_custom_call.1} parent=1 // pred_region
      %49 = dma.done [#allocation4], 128
    $region17: #{tpu_custom_call.1} parent=1 // pred_fallthru
      _
    // Predicated region
    $region18: #{tpu_custom_call.1} parent=1 // pred_check
      _
    $region19: #{tpu_custom_call.1} parent=1 // pred_check_branch
      %51 = sbr.rel (0) target = $region21
    $region20: #{tpu_custom_call.1} parent=1 // pred_region
      %53 = dma.done [#allocation7], 512
    $region21: #{tpu_custom_call.1} parent=1 // pred_fallthru
      _
    // Predicated region
    $region22: #{tpu_custom_call.1} parent=1 // pred_check
      _
    $region23: #{tpu_custom_call.1} parent=1 // pred_check_branch
      %55 = sbr.rel (0) target = $region25
    $region24: #{tpu_custom_call.1} parent=1 // pred_region
      %57 = dma.done [#allocation7], 32
    $region25: #{tpu_custom_call.1} parent=1 // pred_fallthru
      _
    %p58 = scmp.eq.s32.totalorder 0, 0
    // Predicated region
    $region26: #{tpu_custom_call.1} parent=1 // pred_check
      %p59 = pneg %p58
    $region27: #{tpu_custom_call.1} parent=1 // pred_check_branch
      %61 = sbr.rel (%p59) target = $region29
    $region28: #{tpu_custom_call.1} parent=1 // pred_region
      %62 = vst [vmem:[#allocation2] sm:$0xff] 0.0
    $region29: #{tpu_custom_call.1} parent=1 // pred_fallthru
      _
    %v63 = vld [vmem:[#allocation2] sm:$0xff]
    %v64 = vld [vmem:[#allocation3] sm:$0xff]
    %v65 = vld [vmem:[#allocation6] sm:$0xff]
    %v66 = vld [vmem:[#allocation6 + $0x8] sm:$0xff]
    %v67 = vld [vmem:[#allocation6 + $0x10] sm:$0xff]
    %v68 = vld [vmem:[#allocation6 + $0x18] sm:$0xff]
    %vm69 = vcmask 261120
    %v71 = vsel %vm69, %v64, 0
    %73 = vmatpush.msra.mxu0 0.0
    %74 = vmatpush.msra.mxu0 0.0
    %75 = vmatpush.msra.mxu0 0.0
    %76 = vmatpush.msra.mxu0 0.0
    %77 = vmatpush.msra.mxu0 0.0
    %78 = vmatpush.msra.mxu0 0.0
    %79 = vmatpush.msra.mxu0 0.0
    %80 = vmatpush.msra.mxu0 0.0
    %81 = vmatpush.msra.mxu0 0.0
    %82 = vmatpush.msra.mxu0 0.0
    %83 = vmatpush.msra.mxu0 0.0
    %84 = vmatpush.msra.mxu0 0.0
    %85 = vmatpush.msra.mxu0 %v68
    %86 = vmatpush.msra.mxu0 %v67
    %87 = vmatpush.msra.mxu0 %v66
    %88 = vmatpush.msra.mxu0 %v65
    %89 = vmatmul.f32.gmra.mxu0 %v71
    %v90 = vpop.f32.mrf.mxu0
    %v91 = vadd.f32 0.0, %v90
    %92 = vdwg.mxu0
    %v93 = vadd.f32 %v63, %v91
    %94 = vst [vmem:[#allocation2] sm:$0xff] %v93
    // Predicated region
    $region30: #{tpu_custom_call.1} parent=1 // pred_check
      %p95 = pneg %p58
    $region31: #{tpu_custom_call.1} parent=1 // pred_check_branch
      %97 = sbr.rel (%p95) target = $region33
    $region32: #{tpu_custom_call.1} parent=1 // pred_region
      %v98 = vld [vmem:[#allocation2] sm:$0xff]
      %v99 = vrot.slane %v98, 4
      %v100 = vadd.f32 %v98, %v99
      %v101 = vrot.slane %v100, 2
      %v102 = vadd.f32 %v100, %v101
      %v103 = vrot.slane %v102, 1
      %v104 = vadd.f32 %v102, %v103
      %v105 = vmul.f32 %v104, 0.125
      %v106 = vsub.f32 %v98, %v105
      %v107 = vmul.f32 %v106, %v106
      %v108 = vrot.slane %v107, 4
      %v109 = vadd.f32 %v107, %v108
      %v110 = vrot.slane %v109, 2
      %v111 = vadd.f32 %v109, %v110
      %v112 = vrot.slane %v111, 1
      %v113 = vadd.f32 %v111, %v112
      %v114 = vmul.f32 %v113, 0.125
      %v115 = vld [vmem:[#allocation8] sm:$0x3]
      %v116 = vadd.f32 %v114, 1e-05
      %v117 = vrsqrt.pop %v116
      %v118 = vmul.f32 %v117, %v116
      %v119 = vmul.f32 %v118, %v117
      %v120 = vmul.f32 0.5, %v119
      %v121 = vsub.f32 1.5, %v120
      %v122 = vmul.f32 %v117, %v121
      %vm123 = vweird.f32 %v116
      %vm124 = vweird.f32 %v117
      %vm125 = vmor %vm123, %vm124
      %v126 = vsel %vm125, %v117, %v122
      %v127 = vmul.f32 %v115, %v126
      %v128 = vperm.slane %v127, 0
      %v129 = vmul.f32 %v106, %v128
      %v130 = vperm.slane %v115, 1
      %v131 = vadd.f32 %v129, %v130
      %v132 = vmax.f32 %v131, 0.0
      %133 = vst [vmem:[#allocation9] sm:$0xff] %v132
    $region33: #{tpu_custom_call.1} parent=1 // pred_fallthru
      _
    // Predicated region
    $region34: #{tpu_custom_call.1} parent=1 // pred_check
      _
    $region35: #{tpu_custom_call.1} parent=1 // pred_check_branch
      %135 = sbr.rel (0) target = $region37
    $region36: #{tpu_custom_call.1} parent=1 // pred_region
      %137 = vsyncadd [#allocation5], 0
      %s139 = sshll.u32 [#allocation9], 4
      %s140 = int_to_ptr.vmem [resolvable:$true] %s139
      %s141 = sshll.u32 %s3, 4
      %s142 = int_to_ptr.hbm [resolvable:$true] %s141
      %144 = dma.vmem_to_hbm [thread:$0]  %s140, 128, %s142, [#allocation5]
    $region37: #{tpu_custom_call.1} parent=1 // pred_fallthru
      _
    // Predicated region
    $region38: #{tpu_custom_call.1} parent=1 // pred_check
      _
    $region39: #{tpu_custom_call.1} parent=1 // pred_check_branch
      %146 = sbr.rel (0) target = $region41
    $region40: #{tpu_custom_call.1} parent=1 // pred_region
      %148 = dma.done [#allocation5], 128
    $region41: #{tpu_custom_call.1} parent=1 // pred_fallthru
      _
    %149 = vsyncpa [#allocation4], 1
    %150 = vsyncpa [#allocation7], 1
    %151 = vsyncpa [#allocation5], 1

</llo_original>
